<compile_context>
chip_gen: v7x
topology: tpu7x:2x2x1
jax: 0.10.0
libtpu: 0.0.40
codegen_flags: <defaults>
</compile_context>

<pallas_src>
import functools

import jax
import jax.numpy as jnp
from jax.experimental import pallas as pl
from jax.experimental.pallas import tpu as pltpu


def _round_up(x: int, m: int) -> int:
    return (x + m - 1) // m * m


def _mlp_sigmoid_kernel(x_ref, w1_ref, b1_ref, w2_ref, b2_ref, out_ref):
    # linear1: (TM, in) @ (in, hid_pad) -> f32 accumulation, bf16 MXU operands.
    x = x_ref[...].astype(w1_ref.dtype)           # no-op if x already bf16
    h = jnp.dot(x, w1_ref[...], preferred_element_type=jnp.float32)
    h = jnp.maximum(h + b1_ref[...], 0.0)         # bias + ReLU in f32
    # linear2 with a single output unit: broadcast-multiply + lane reduction
    # (avoids an N=1 MXU matmul and keeps the output un-padded at width 1).
    o = jnp.sum(h * w2_ref[...], axis=-1, keepdims=True) + b2_ref[...]
    out_ref[...] = jax.nn.sigmoid(o).astype(out_ref.dtype)   # EUP exp, f32 out


def init_binclass_params(w1, b1, w2, b2, *, compute_dtype=jnp.bfloat16):
    """One-time parameter prep (NOT on the per-call hot path).

    Takes PyTorch nn.Linear layouts:
      w1: (hidden, in), b1: (hidden,), w2: (1, hidden), b2: (1,)
    Returns:
      w1 transposed to (in, hid_pad) bf16 (hidden padded to a multiple of 128,
      the K/in dim is left unpadded), b1 as (1, hid_pad) f32, w2 as a single
      (1, hid_pad) f32 row, b2 as (1, 1) f32. Zero-padded hidden columns
      contribute exactly 0 to the output.
    """
    hidden, in_size = w1.shape
    n_out = w2.shape[0]
    assert n_out == 1, "binary-classifier head expected"

    hid_pad = _round_up(hidden, 128)

    w1_t = jnp.zeros((in_size, hid_pad), compute_dtype)
    w1_t = w1_t.at[:, :hidden].set(w1.T.astype(compute_dtype))
    b1_p = jnp.zeros((1, hid_pad), jnp.float32).at[0, :hidden].set(
        b1.astype(jnp.float32))
    w2_p = jnp.zeros((1, hid_pad), jnp.float32).at[0, :hidden].set(
        w2[0].astype(jnp.float32))
    b2_p = b2.astype(jnp.float32).reshape(1, 1)

    return dict(w1=w1_t, b1=b1_p, w2=w2_p, b2=b2_p,
                in_size=in_size, hidden=hidden, n_out=n_out)


def neural_net_binclass(params, x, *, tm: int = 2048):
    """Forward pass: sigmoid(linear2(relu(linear1(x)))).

    Args:
      params: output of init_binclass_params (prepped once, reused per call).
      x: (batch, input_size) float32 or bfloat16.
    Returns:
      (batch, 1) float32 probabilities.
    """
    batch, in_size = x.shape
    assert in_size == params["in_size"]
    hid_pad = params["w1"].shape[1]

    # Batch tile: multiple of 8 (sublane). Large to amortize per-step overhead,
    # but clamped so the grid has >=2 steps when batch allows (v7x: 2 TCs).
    half_batch = -(-batch // 2)
    tm = max(8, min(tm, _round_up(half_batch, 8)))
    b_pad = _round_up(batch, tm)

    # Only hot-path glue: pad batch rows (cheap; keeps edge tiles well-defined).
    if b_pad != batch:
        x = jnp.pad(x, ((0, b_pad - batch), (0, 0)))

    grid = (b_pad // tm,)
    x_bytes = x.dtype.itemsize

    # VMEM budget: double-buffered x/out tiles + resident weights/biases.
    working_set = (2 * tm * in_size * x_bytes          # x tiles
                   + in_size * hid_pad * 2             # w1 (bf16)
                   + 2 * hid_pad * 4 + 4               # b1, w2, b2 (f32)
                   + 2 * tm * 1 * 4)                   # out tiles (f32)
    vmem_limit = int(min(max(2 * working_set, 16 * 1024 * 1024),
                         48 * 1024 * 1024))

    cost = pl.CostEstimate(
        flops=2 * b_pad * hid_pad * (in_size + 1),
        transcendentals=b_pad,                         # sigmoid
        bytes_accessed=(b_pad * in_size * x_bytes
                        + in_size * hid_pad * 2
                        + 2 * hid_pad * 4 + 4
                        + b_pad * 1 * 4))

    out = pl.pallas_call(
        _mlp_sigmoid_kernel,
        out_shape=jax.ShapeDtypeStruct((b_pad, 1), jnp.float32),
        grid=grid,
        in_specs=[
            pl.BlockSpec((tm, in_size), lambda i: (i, 0)),     # x: tiled batch
            pl.BlockSpec((in_size, hid_pad), lambda i: (0, 0)),  # w1: resident
            pl.BlockSpec((1, hid_pad), lambda i: (0, 0)),        # b1: resident
            pl.BlockSpec((1, hid_pad), lambda i: (0, 0)),        # w2: resident
            pl.BlockSpec((1, 1), lambda i: (0, 0)),              # b2: resident
        ],
        out_specs=pl.BlockSpec((tm, 1), lambda i: (i, 0)),
        compiler_params=pltpu.CompilerParams(
            dimension_semantics=("parallel",),
            vmem_limit_bytes=vmem_limit),
        cost_estimate=cost,
    )(x, params["w1"], params["b1"], params["w2"], params["b2"])

    return out[:batch]


def _reference(x, w1, b1, w2, b2):
    h = jnp.maximum(x @ w1.T + b1, 0.0)
    return jax.nn.sigmoid(h @ w2.T + b2)


if __name__ == "__main__":
    # Small shapes consistent with the module's forward.
    batch, input_size, hidden_size = 8, 32, 32
    n_out = 1  # binary classifier head

    key = jax.random.PRNGKey(0)
    kx, kw1, kb1, kw2, kb2 = jax.random.split(key, 5)

    x = jax.random.normal(kx, (batch, input_size), dtype=jnp.float32)

    # Deterministic PyTorch-ish uniform init: U(-1/sqrt(fan_in), 1/sqrt(fan_in)).
    bound1 = 1.0 / (input_size ** 0.5)
    w1 = jax.random.uniform(kw1, (hidden_size, input_size), jnp.float32, -bound1, bound1)
    b1 = jax.random.uniform(kb1, (hidden_size,), jnp.float32, -bound1, bound1)
    bound2 = 1.0 / (hidden_size ** 0.5)
    w2 = jax.random.uniform(kw2, (n_out, hidden_size), jnp.float32, -bound2, bound2)
    b2 = jax.random.uniform(kb2, (n_out,), jnp.float32, -bound2, bound2)

    # One-time param prep (transpose / pad hidden / bf16 cast) -- outside hot path.
    params = init_binclass_params(w1, b1, w2, b2)

    fwd = jax.jit(functools.partial(neural_net_binclass, params))
    out = jax.block_until_ready(fwd(x))

    ref = _reference(x, w1, b1, w2, b2)
    assert out.shape == (batch, n_out), out.shape
    # bf16 MXU operand for linear1 -> loose-ish tolerance on probabilities.
    assert jnp.allclose(out, ref, atol=2e-2, rtol=2e-2), (
        float(jnp.max(jnp.abs(out - ref))))

    print("KERNEL_OK")
</pallas_src>

<mosaic_0001>
module attributes {stable_mosaic.version = 11 : i64} {
  func.func @_mlp_sigmoid_kernel(%arg0: i32, %arg1: memref<8x32xf32, #tpu.memory_space<vmem>>, %arg2: memref<32x128xbf16, #tpu.memory_space<vmem>>, %arg3: memref<1x128xf32, #tpu.memory_space<vmem>>, %arg4: memref<1x128xf32, #tpu.memory_space<vmem>>, %arg5: memref<1x1xf32, #tpu.memory_space<vmem>>, %arg6: memref<8x1xf32, #tpu.memory_space<vmem>>) attributes {dimension_semantics = [#tpu.dimension_semantics<parallel>], iteration_bounds = array<i64: 1>, scalar_prefetch = 0 : i64, scratch_operands = 0 : i64, tpu.core_type = #tpu.core_type<tc>, window_params = [{transform_indices = @transform_0, window_bounds = array<i64: 8, 32>}, {pipeline_mode = #tpu.pipeline_mode<synchronous>, transform_indices = @transform_1, window_bounds = array<i64: 32, 128>}, {pipeline_mode = #tpu.pipeline_mode<synchronous>, transform_indices = @transform_2, window_bounds = array<i64: 1, 128>}, {pipeline_mode = #tpu.pipeline_mode<synchronous>, transform_indices = @transform_3, window_bounds = array<i64: 1, 128>}, {pipeline_mode = #tpu.pipeline_mode<synchronous>, transform_indices = @transform_4, window_bounds = array<i64: 1, 1>}, {transform_indices = @transform_5, window_bounds = array<i64: 8, 1>}]} {
    %c0 = arith.constant 0 : index
    %c0_0 = arith.constant 0 : index
    %0 = vector.load %arg1[%c0, %c0_0] : memref<8x32xf32, #tpu.memory_space<vmem>>, vector<8x32xf32>
    %1 = arith.truncf %0 : vector<8x32xf32> to vector<8x32xbf16>
    %c0_1 = arith.constant 0 : index
    %c0_2 = arith.constant 0 : index
    %2 = vector.load %arg2[%c0_1, %c0_2] : memref<32x128xbf16, #tpu.memory_space<vmem>>, vector<32x128xbf16>
    %cst = arith.constant dense<0.000000e+00> : vector<8x128xf32>
    %3 = tpu.matmul %1, %2, %cst {dimension_numbers = #tpu.dot_dimension_numbers<[1], [0], [0], [1], [0, 0, 1, 1], [], []>} : vector<8x32xbf16>, vector<32x128xbf16>, vector<8x128xf32> -> vector<8x128xf32>
    %c0_3 = arith.constant 0 : index
    %c0_4 = arith.constant 0 : index
    %4 = vector.load %arg3[%c0_3, %c0_4] : memref<1x128xf32, #tpu.memory_space<vmem>>, vector<1x128xf32>
    %5 = vector.broadcast %4 : vector<1x128xf32> to vector<8x128xf32>
    %6 = arith.addf %3, %5 : vector<8x128xf32>
    %cst_5 = arith.constant 0.000000e+00 : f32
    %7 = vector.broadcast %cst_5 : f32 to vector<8x128xf32>
    %8 = arith.maximumf %6, %7 : vector<8x128xf32>
    %c0_6 = arith.constant 0 : index
    %c0_7 = arith.constant 0 : index
    %9 = vector.load %arg4[%c0_6, %c0_7] : memref<1x128xf32, #tpu.memory_space<vmem>>, vector<1x128xf32>
    %10 = vector.broadcast %9 : vector<1x128xf32> to vector<8x128xf32>
    %11 = arith.mulf %8, %10 : vector<8x128xf32>
    %cst_8 = arith.constant dense<0.000000e+00> : vector<8xf32>
    %12 = vector.multi_reduction <add>, %11, %cst_8 [1] : vector<8x128xf32> to vector<8xf32>
    %13 = vector.shape_cast %12 : vector<8xf32> to vector<8x1xf32>
    %c0_9 = arith.constant 0 : index
    %c0_10 = arith.constant 0 : index
    %14 = vector.load %arg5[%c0_9, %c0_10] : memref<1x1xf32, #tpu.memory_space<vmem>>, vector<1x1xf32>
    %15 = vector.broadcast %14 : vector<1x1xf32> to vector<8x1xf32>
    %16 = arith.addf %13, %15 : vector<8x1xf32>
    %17 = arith.negf %16 : vector<8x1xf32>
    %18 = math.exp %17 : vector<8x1xf32>
    %cst_11 = arith.constant 1.000000e+00 : f32
    %19 = vector.broadcast %cst_11 : f32 to vector<8x1xf32>
    %20 = arith.addf %19, %18 : vector<8x1xf32>
    %21 = arith.divf %19, %20 : vector<8x1xf32>
    %c0_12 = arith.constant 0 : index
    %c0_13 = arith.constant 0 : index
    %22 = vector.load %arg6[%c0_12, %c0_13] : memref<8x1xf32, #tpu.memory_space<vmem>>, vector<8x1xf32>
    tpu.vector_store %arg6[%c0_12, %c0_13], %21 {strides = array<i32>} : memref<8x1xf32, #tpu.memory_space<vmem>>, vector<8x1xf32>,
    return
  }
  func.func @transform_0(%arg0: i32) -> (i32, i32) {
    %c0_i32 = arith.constant 0 : i32
    %c0_i32_0 = arith.constant 0 : i32
    return %arg0, %c0_i32 : i32, i32
  }
  func.func @transform_1(%arg0: i32) -> (i32, i32) {
    %c0_i32 = arith.constant 0 : i32
    %c0_i32_0 = arith.constant 0 : i32
    %c0_i32_1 = arith.constant 0 : i32
    return %c0_i32, %c0_i32_0 : i32, i32
  }
  func.func @transform_2(%arg0: i32) -> (i32, i32) {
    %c0_i32 = arith.constant 0 : i32
    %c0_i32_0 = arith.constant 0 : i32
    %c0_i32_1 = arith.constant 0 : i32
    return %c0_i32, %c0_i32_0 : i32, i32
  }
  func.func @transform_3(%arg0: i32) -> (i32, i32) {
    %c0_i32 = arith.constant 0 : i32
    %c0_i32_0 = arith.constant 0 : i32
    %c0_i32_1 = arith.constant 0 : i32
    return %c0_i32, %c0_i32_0 : i32, i32
  }
  func.func @transform_4(%arg0: i32) -> (i32, i32) {
    %c0_i32 = arith.constant 0 : i32
    %c0_i32_0 = arith.constant 0 : i32
    %c0_i32_1 = arith.constant 0 : i32
    return %c0_i32, %c0_i32_0 : i32, i32
  }
  func.func @transform_5(%arg0: i32) -> (i32, i32) {
    %c0_i32 = arith.constant 0 : i32
    %c0_i32_0 = arith.constant 0 : i32
    return %arg0, %c0_i32 : i32, i32
  }
}

</mosaic_0001>

<llo_original>
// kernel: neural_net_binclass.1
$region0: #{neural_net_binclass.1}
  #allocation0 [shape = 'u32[]', space=smem, size = 0x4, offset = 0x4, fixed_abs, tag = 'smem constant byte address 0x4 - core index']
  #allocation1 [shape = 'u32[144,128]{1,0:T(1,128)}', space=vmem, size = 0x12000, scoped, tag = 'internal scratch']
  #allocation2 [shape = 'f32[1,1]{1,0:T(1,128)S(1)}', space=vmem, size = 0x200, scoped, tag = 'scoped memory for neural_net_binclass.1']
  %s0 = inlined_call_operand.hbm [shape: f32[8,32], index: 0, kind: input, shape index: {}]
  %s1 = inlined_call_operand.vmem [shape: bf16[32,128], index: 1, kind: input, shape index: {}]
  %s2 = inlined_call_operand.vmem [shape: f32[1,128], index: 2, kind: input, shape index: {}]
  %s3 = inlined_call_operand.vmem [shape: f32[1,128], index: 3, kind: input, shape index: {}]
  %s4 = inlined_call_operand.<no memory space> [shape: f32[1,1], index: 4, kind: input, shape index: {}]
  %s5 = inlined_call_operand.vmem [shape: f32[8,1], index: 5, kind: output, shape index: {}]
  %s6 = sld [smem:[#allocation0]]
  $region34: #{neural_net_binclass.1} parent=0
    _
  %s8 = ssub.s32 1, %s6
  %s9 = scalar_select 0, %s8, %s6
  %v10 = vstv %s4
  %11 = vst [vmem:[#allocation2] sm:$0x1] %v10
  $region1: #{neural_net_binclass.1} parent=0
    #allocation3 [shape = 'u8[4096]{0}', space=vmem, size = 0x1000, scoped, tag = 'input window, operand 0, single buffered']
    #allocation4 [shape = 's32[1]{0}', space=sflag, size = 0x4, scoped, tag = 'scoped memory for neural_net_binclass.1']
    %12 = vsyncpa [#allocation4], 0
    // Predicated region
    $region2: #{neural_net_binclass.1} parent=1 // pred_check
      _
    $region3: #{neural_net_binclass.1} parent=1 // pred_check_branch
      %14 = sbr.rel (0) target = $region5
    $region4: #{neural_net_binclass.1} parent=1 // pred_region
      %s16 = ssub.s32 128, 128
      %17 = vsyncadd [#allocation4], %s16
      %s19 = sshll.u32 [#allocation3], 4
      %s20 = int_to_ptr.vmem [resolvable:$true] %s19
      %22 = dma.hbm_to_vmem [thread:$0]  %s0, 128, %s20, [#allocation4]
    $region5: #{neural_net_binclass.1} parent=1 // pred_fallthru
      _
    // Predicated region
    $region6: #{neural_net_binclass.1} parent=1 // pred_check
      _
    $region7: #{neural_net_binclass.1} parent=1 // pred_check_branch
      %24 = sbr.rel (0) target = $region9
    $region8: #{neural_net_binclass.1} parent=1 // pred_region
      _
    $region9: #{neural_net_binclass.1} parent=1 // pred_fallthru
      _
    // Predicated region
    $region10: #{neural_net_binclass.1} parent=1 // pred_check
      _
    $region11: #{neural_net_binclass.1} parent=1 // pred_check_branch
      %26 = sbr.rel (0) target = $region13
    $region12: #{neural_net_binclass.1} parent=1 // pred_region
      _
    $region13: #{neural_net_binclass.1} parent=1 // pred_fallthru
      _
    // Predicated region
    $region14: #{neural_net_binclass.1} parent=1 // pred_check
      _
    $region15: #{neural_net_binclass.1} parent=1 // pred_check_branch
      %28 = sbr.rel (0) target = $region17
    $region16: #{neural_net_binclass.1} parent=1 // pred_region
      _
    $region17: #{neural_net_binclass.1} parent=1 // pred_fallthru
      _
    // Predicated region
    $region18: #{neural_net_binclass.1} parent=1 // pred_check
      _
    $region19: #{neural_net_binclass.1} parent=1 // pred_check_branch
      %30 = sbr.rel (0) target = $region21
    $region20: #{neural_net_binclass.1} parent=1 // pred_region
      _
    $region21: #{neural_net_binclass.1} parent=1 // pred_fallthru
      _
    // Predicated region
    $region22: #{neural_net_binclass.1} parent=1 // pred_check
      _
    $region23: #{neural_net_binclass.1} parent=1 // pred_check_branch
      %32 = sbr.rel (0) target = $region25
    $region24: #{neural_net_binclass.1} parent=1 // pred_region
      %33 = dma.done [#allocation4], 128
    $region25: #{neural_net_binclass.1} parent=1 // pred_fallthru
      _
    %v35 = vld [vmem:[#allocation3] sm:$0xff]
    %v36 = vpack.c.bf16 %v35, %v35
    %v37 = vld [vmem:[%s1] sm:$0xf]
    %v38 = vld [vmem:[%s1 + $0x4] sm:$0xf]
    %v39 = vld [vmem:[%s1 + $0x8] sm:$0xf]
    %v40 = vld [vmem:[%s1 + $0xc] sm:$0xf]
    %v41 = vld [vmem:[%s2] sm:$0x1]
    %v43 = vlaneseq
    %v44 = vshrl.u32 %v43, 7
    %v45 = vsub.s32 0, %v44
    %v46 = vrot.slane %v41, %v45
    %v52 = vunpack.c.l.b16 %v37
    %v53 = vunpack.c.l.b16 %v38
    %v54 = vunpack.c.l.b16 %v39
    %v55 = vunpack.c.l.b16 %v40
    %v56 = vpack.c.b16 %v53, %v52
    %v57 = vpack.c.b16 %v55, %v54
    %vm60 = vcmask 261120
    %v62 = vsel %vm60, %v36, 0
    %64 = vmatprep.subr.bf16.mxu0 0
    %65 = vmatpush1.bf16.msra.mxu0 %v56
    %66 = vmatprep.subr.bf16.mxu0 0
    %67 = vmatpush1.bf16.msra.mxu0 %v57
    %68 = vmatprep.subr.bf16.mxu0 0
    %69 = vmatpush1.bf16.msra.mxu0 0
    %70 = vmatprep.subr.bf16.mxu0 0
    %71 = vmatpush1.bf16.msra.mxu0 0
    %72 = vmatprep.subr.bf16.mxu0 0
    %73 = vmatpush1.bf16.msra.mxu0 0
    %74 = vmatprep.subr.bf16.mxu0 0
    %75 = vmatpush1.bf16.msra.mxu0 0
    %76 = vmatprep.subr.bf16.mxu0 0
    %77 = vmatpush1.bf16.msra.mxu0 0
    %78 = vmatprep.subr.bf16.mxu0 0
    %79 = vmatpush1.bf16.msra.mxu0 0
    %80 = vmatprep.subr.bf16.mxu0 0
    %81 = vmatpush1.bf16.msra.mxu0 0
    %82 = vmatprep.subr.bf16.mxu0 0
    %83 = vmatpush1.bf16.msra.mxu0 0
    %84 = vmatprep.subr.bf16.mxu0 0
    %85 = vmatpush1.bf16.msra.mxu0 0
    %86 = vmatprep.subr.bf16.mxu0 0
    %87 = vmatpush1.bf16.msra.mxu0 0
    %88 = vmatprep.subr.bf16.mxu0 0
    %89 = vmatpush1.bf16.msra.mxu0 0
    %90 = vmatprep.subr.bf16.mxu0 0
    %91 = vmatpush1.bf16.msra.mxu0 0
    %92 = vmatprep.subr.bf16.mxu0 0
    %93 = vmatpush1.bf16.msra.mxu0 0
    %94 = vmatprep.subr.bf16.mxu0 0
    %95 = vmatpush1.bf16.msra.mxu0 0
    %96 = vmatprep.mubr.bf16.mxu0 0
    %97 = vmatmul.mubr.bf16.gmra.mrb[0].mxu0 %v62
    %v98 = vpop.f32.mrb[0].mxu0
    %v99 = vadd.f32 %v46, %v98
    %v100 = vpop.f32.mrb[0].mxu0
    %v101 = vpop.f32.mrb[0].mxu0
    %v102 = vpop.f32.mrb[0].mxu0
    %103 = vdwg.mxu0
    %v104 = vmax.f32 %v99, 0.0
    %v105 = vld [vmem:[%s3] sm:$0x1]
    %v107 = vlaneseq
    %v108 = vshrl.u32 %v107, 7
    %v109 = vsub.s32 0, %v108
    %v110 = vrot.slane %v105, %v109
    %v112 = vmul.f32 %v104, %v110
    %113 = vadd.xlane.f32.xlu0 %v112
    %v114 = vpop.xlane.xlu0 %113
    %v115 = vld [vmem:[#allocation2] sm:$0x1]
    %v117 = vlaneseq
    %v118 = vshrl.u32 %v117, 7
    %v119 = vsub.s32 0, %v118
    %v120 = vrot.slane %v115, %v119
    %v122 = vadd.f32 %v114, %v120
    %v123 = vxor.u32 %v122, 2147483648
    %v124 = vmul.f32 %v123, 1.442695
    %v125 = vpow.pop %v124
    %v126 = vadd.f32 %v125, 1.0
    %v127 = vrcp.pop %v126
    %v128 = vmul.f32 1.0, %v127
    %vm129 = vcmask 7168
    %130 = vst.msk [vmem:[%s5] sm:$0xff] %vm129, %v128
    // Predicated region
    $region26: #{neural_net_binclass.1} parent=1 // pred_check
      _
    $region27: #{neural_net_binclass.1} parent=1 // pred_check_branch
      %132 = sbr.rel (0) target = $region29
    $region28: #{neural_net_binclass.1} parent=1 // pred_region
      _
    $region29: #{neural_net_binclass.1} parent=1 // pred_fallthru
      _
    // Predicated region
    $region30: #{neural_net_binclass.1} parent=1 // pred_check
      _
    $region31: #{neural_net_binclass.1} parent=1 // pred_check_branch
      %134 = sbr.rel (0) target = $region33
    $region32: #{neural_net_binclass.1} parent=1 // pred_region
      _
    $region33: #{neural_net_binclass.1} parent=1 // pred_fallthru
      _
    %135 = vsyncpa [#allocation4], 1

</llo_original>
